<compile_context>
chip_gen: v5e
topology: v5e:2x2
jax: 0.10.0
libtpu: 0.0.40
codegen_flags: <defaults>
</compile_context>

<pallas_src>
import functools

import jax
import jax.numpy as jnp
from jax import lax
from jax.experimental import pallas as pl
from jax.experimental.pallas import tpu as pltpu


def _encoder_kernel(w_ref, gamma_ref, beta_ref, x_ref, bits_ref, o_ref, xp_ref, *,
                    ksize, padding, l_out, p, training, eps):
    """Fused Conv1d(no bias) -> ReLU -> BatchNorm1d (batch stats) -> Dropout."""
    n, c_in, l = x_ref.shape
    c_out = o_ref.shape[1]
    f = c_in * ksize
    apply_dropout = training and p > 0.0

    # ---- In-kernel zero padding of the length (lane) axis via VMEM scratch ----
    xp_ref[...] = jnp.zeros_like(xp_ref)
    xp_ref[:, :, padding:padding + l] = x_ref[...].astype(jnp.float32)
    xp = xp_ref[...]                                            # (N, C_in, L + 2*pad)

    # ---- im2col: K shifted lane-views stacked along the channel (sublane) axis ----
    patches = jnp.concatenate(
        [xp[:, :, kk:kk + l_out] for kk in range(ksize)], axis=1)   # (N, C_in*K, L_out)

    # ---- Conv1d as one batched MXU matmul: (N, C_out, F) x (N, F, L_out) ----
    w_b = jnp.broadcast_to(w_ref[...][None, :, :], (n, c_out, f))
    y = jnp.einsum('bof,bfl->bol', w_b, patches,
                   preferred_element_type=jnp.float32)              # (N, C_out, L_out)

    # ---- ReLU ----
    y = jnp.maximum(y, 0.0)

    # ---- BatchNorm1d, training-mode batch statistics (biased variance), f32 ----
    # TODO(synk): eval-mode PyTorch BatchNorm1d uses running_mean/var (stateful);
    # here eval still normalizes with batch statistics.
    inv_count = 1.0 / float(n * l_out)
    mean = jnp.sum(y, axis=(0, 2), keepdims=True) * inv_count       # (1, C_out, 1)
    centered = y - mean
    var = jnp.sum(centered * centered, axis=(0, 2), keepdims=True) * inv_count
    y = centered * lax.rsqrt(var + eps) * gamma_ref[...] + beta_ref[...]

    # ---- Dropout (inverted dropout, keep-prob = 1 - p), one full-tensor mask ----
    if apply_dropout:
        # Truncating threshold: keep-prob error < 2^-32 (negligible).
        thr = jnp.uint32(min(int(p * 4294967296.0), 4294967295))
        keep = bits_ref[...] >= thr
        y = jnp.where(keep, y * (1.0 / (1.0 - p)), 0.0)

    # ---- Single dense store of the whole (N, C_out, L_out) tensor ----
    o_ref[...] = y.astype(o_ref.dtype)


def encoder_forward(x, weight, gamma, beta, *, padding=1, stride=1,
                    dropout_p=0.1, training=True, eps=1e-5, seed=0):
    """x: (N, C_in, L) f32; weight: (C_out, C_in, K); gamma/beta: (C_out,)."""
    assert stride == 1, "only stride=1 (module default) is implemented"
    n, c_in, l = x.shape
    c_out, c_in_w, ksize = weight.shape
    assert c_in_w == c_in
    l_out = (l + 2 * padding - ksize) // stride + 1

    # Weight flattened to (C_out, K*C_in) so column index = kk*C_in + c,
    # matching the in-kernel im2col concat order.
    w2 = jnp.transpose(weight, (0, 2, 1)).reshape(c_out, ksize * c_in).astype(jnp.float32)
    gamma3 = gamma.reshape(1, c_out, 1).astype(jnp.float32)
    beta3 = beta.reshape(1, c_out, 1).astype(jnp.float32)

    apply_dropout = training and dropout_p > 0.0
    if apply_dropout:
        bits = jax.random.bits(jax.random.PRNGKey(seed), (n, c_out, l_out),
                               dtype=jnp.uint32)
    else:
        bits = jnp.zeros((n, c_out, l_out), dtype=jnp.uint32)   # unused in kernel

    kernel = functools.partial(
        _encoder_kernel, ksize=ksize, padding=padding, l_out=l_out,
        p=dropout_p, training=training, eps=eps)

    vmem = pl.BlockSpec(memory_space=pltpu.MemorySpace.VMEM)
    return pl.pallas_call(
        kernel,
        out_shape=jax.ShapeDtypeStruct((n, c_out, l_out), jnp.float32),
        in_specs=[vmem, vmem, vmem, vmem, vmem],
        out_specs=vmem,
        scratch_shapes=[pltpu.VMEM((n, c_in, l + 2 * padding), jnp.float32)],
    )(w2, gamma3, beta3, x.astype(jnp.float32), bits)


def _reference_no_dropout(x, weight, gamma, beta, *, padding=1, eps=1e-5):
    """Pure-JAX reference: conv -> relu -> batchnorm (batch statistics)."""
    y = lax.conv_general_dilated(
        x, weight, window_strides=(1,), padding=[(padding, padding)],
        dimension_numbers=("NCH", "OIH", "NCH"))
    y = jnp.maximum(y, 0.0)
    mean = jnp.mean(y, axis=(0, 2), keepdims=True)
    var = jnp.mean((y - mean) ** 2, axis=(0, 2), keepdims=True)
    return (y - mean) * lax.rsqrt(var + eps) * gamma[None, :, None] + beta[None, :, None]


if __name__ == "__main__":
    key = jax.random.PRNGKey(0)
    kx, kw, kw2 = jax.random.split(key, 3)

    # ---- Config 1: module defaults (in=3, out=1, k=3, pad=1), N=2, L=16 ----
    x = jax.random.normal(kx, (2, 3, 16), dtype=jnp.float32)
    weight = 0.3 * jax.random.normal(kw, (1, 3, 3), dtype=jnp.float32)
    gamma = jnp.ones((1,), dtype=jnp.float32)
    beta = jnp.zeros((1,), dtype=jnp.float32)

    out_det = encoder_forward(x, weight, gamma, beta, training=False)
    ref = _reference_no_dropout(x, weight, gamma, beta)
    assert jnp.allclose(out_det, ref, atol=1e-4, rtol=1e-4), "mismatch (C_out=1)"

    # ---- Config 2: wider output channels to exercise the vectorized path ----
    weight8 = 0.3 * jax.random.normal(kw2, (8, 3, 3), dtype=jnp.float32)
    gamma8 = jnp.linspace(0.5, 1.5, 8).astype(jnp.float32)
    beta8 = jnp.linspace(-0.2, 0.2, 8).astype(jnp.float32)
    out_det8 = encoder_forward(x, weight8, gamma8, beta8, training=False)
    ref8 = _reference_no_dropout(x, weight8, gamma8, beta8)
    assert jnp.allclose(out_det8, ref8, atol=1e-4, rtol=1e-4), "mismatch (C_out=8)"

    # ---- Full training-mode forward (conv -> relu -> batchnorm -> dropout) ----
    out = encoder_forward(x, weight, gamma, beta, training=True, seed=0)
    jax.block_until_ready(out)
    assert out.shape == (2, 1, 16)

    print("KERNEL_OK")
</pallas_src>

<mosaic_0001>
module attributes {stable_mosaic.version = 11 : i64} {
  func.func @_encoder_kernel(%arg0: memref<1x9xf32, #tpu.memory_space<vmem>>, %arg1: memref<1x1x1xf32, #tpu.memory_space<vmem>>, %arg2: memref<1x1x1xf32, #tpu.memory_space<vmem>>, %arg3: memref<2x3x16xf32, #tpu.memory_space<vmem>>, %arg4: memref<2x1x16xi32, #tpu.memory_space<vmem>>, %arg5: memref<2x1x16xf32, #tpu.memory_space<vmem>>, %arg6: memref<2x3x18xf32, #tpu.memory_space<vmem>>) attributes {dimension_semantics = [], scalar_prefetch = 0 : i64, scratch_operands = 1 : i64, tpu.core_type = #tpu.core_type<tc>} {
    %cst = arith.constant 0.000000e+00 : f32
    %0 = vector.broadcast %cst : f32 to vector<2x3x18xf32>
    %c0 = arith.constant 0 : index
    %c0_0 = arith.constant 0 : index
    %c0_1 = arith.constant 0 : index
    %1 = vector.load %arg6[%c0, %c0_0, %c0_1] : memref<2x3x18xf32, #tpu.memory_space<vmem>>, vector<2x3x18xf32>
    tpu.vector_store %arg6[%c0, %c0_0, %c0_1], %0 {strides = array<i32>} : memref<2x3x18xf32, #tpu.memory_space<vmem>>, vector<2x3x18xf32>,
    %c0_2 = arith.constant 0 : index
    %c0_3 = arith.constant 0 : index
    %c0_4 = arith.constant 0 : index
    %2 = vector.load %arg3[%c0_2, %c0_3, %c0_4] : memref<2x3x16xf32, #tpu.memory_space<vmem>>, vector<2x3x16xf32>
    %c0_5 = arith.constant 0 : index
    %c0_6 = arith.constant 0 : index
    %c1 = arith.constant 1 : index
    %3 = vector.load %arg6[%c0_5, %c0_6, %c1] : memref<2x3x18xf32, #tpu.memory_space<vmem>>, vector<2x3x16xf32>
    tpu.vector_store %arg6[%c0_5, %c0_6, %c1], %2 {strides = array<i32>} : memref<2x3x18xf32, #tpu.memory_space<vmem>>, vector<2x3x16xf32>,
    %c0_7 = arith.constant 0 : index
    %c0_8 = arith.constant 0 : index
    %c0_9 = arith.constant 0 : index
    %4 = vector.load %arg6[%c0_7, %c0_8, %c0_9] : memref<2x3x18xf32, #tpu.memory_space<vmem>>, vector<2x3x18xf32>
    %5 = vector.extract_strided_slice %4 {offsets = [0, 0, 0], sizes = [2, 3, 16], strides = [1, 1, 1]} : vector<2x3x18xf32> to vector<2x3x16xf32>
    %6 = vector.extract_strided_slice %4 {offsets = [0, 0, 1], sizes = [2, 3, 16], strides = [1, 1, 1]} : vector<2x3x18xf32> to vector<2x3x16xf32>
    %7 = vector.extract_strided_slice %4 {offsets = [0, 0, 2], sizes = [2, 3, 16], strides = [1, 1, 1]} : vector<2x3x18xf32> to vector<2x3x16xf32>
    %8 = tpu.concatenate %5, %6, %7 in 1 : vector<2x3x16xf32>, vector<2x3x16xf32>, vector<2x3x16xf32> -> vector<2x9x16xf32>
    %c0_10 = arith.constant 0 : index
    %c0_11 = arith.constant 0 : index
    %9 = vector.load %arg0[%c0_10, %c0_11] : memref<1x9xf32, #tpu.memory_space<vmem>>, vector<1x9xf32>
    %10 = vector.shape_cast %9 : vector<1x9xf32> to vector<1x1x9xf32>
    %11 = vector.shape_cast %10 : vector<1x1x9xf32> to vector<1x1x9xf32>
    %12 = vector.broadcast %11 : vector<1x1x9xf32> to vector<2x1x9xf32>
    "tpu.trace_start"() <{level = 10 : i32, message = "bof,bfl->bol"}> : () -> ()
    %cst_12 = arith.constant dense<0.000000e+00> : vector<2x1x16xf32>
    %13 = tpu.matmul %12, %8, %cst_12 {dimension_numbers = #tpu.dot_dimension_numbers<[2], [1], [1], [2], [0, 0, 0, 1, 1, 2], [0], [0]>} : vector<2x1x9xf32>, vector<2x9x16xf32>, vector<2x1x16xf32> -> vector<2x1x16xf32>
    "tpu.trace_stop"() : () -> ()
    %cst_13 = arith.constant 0.000000e+00 : f32
    %14 = vector.broadcast %cst_13 : f32 to vector<2x1x16xf32>
    %15 = arith.maximumf %13, %14 : vector<2x1x16xf32>
    %cst_14 = arith.constant dense<0.000000e+00> : vector<1xf32>
    %16 = vector.multi_reduction <add>, %15, %cst_14 [0, 2] : vector<2x1x16xf32> to vector<1xf32>
    %17 = vector.shape_cast %16 : vector<1xf32> to vector<1x1x1xf32>
    %cst_15 = arith.constant 3.125000e-02 : f32
    %18 = vector.broadcast %cst_15 : f32 to vector<1x1x1xf32>
    %19 = arith.mulf %17, %18 : vector<1x1x1xf32>
    %20 = vector.broadcast %19 : vector<1x1x1xf32> to vector<2x1x16xf32>
    %21 = arith.subf %15, %20 : vector<2x1x16xf32>
    %22 = arith.mulf %21, %21 : vector<2x1x16xf32>
    %cst_16 = arith.constant dense<0.000000e+00> : vector<1xf32>
    %23 = vector.multi_reduction <add>, %22, %cst_16 [0, 2] : vector<2x1x16xf32> to vector<1xf32>
    %24 = vector.shape_cast %23 : vector<1xf32> to vector<1x1x1xf32>
    %cst_17 = arith.constant 3.125000e-02 : f32
    %25 = vector.broadcast %cst_17 : f32 to vector<1x1x1xf32>
    %26 = arith.mulf %24, %25 : vector<1x1x1xf32>
    %cst_18 = arith.constant 9.99999974E-6 : f32
    %27 = vector.broadcast %cst_18 : f32 to vector<1x1x1xf32>
    %28 = arith.addf %26, %27 : vector<1x1x1xf32>
    %29 = math.rsqrt %28 : vector<1x1x1xf32>
    %30 = vector.broadcast %29 : vector<1x1x1xf32> to vector<2x1x16xf32>
    %31 = arith.mulf %21, %30 : vector<2x1x16xf32>
    %c0_19 = arith.constant 0 : index
    %c0_20 = arith.constant 0 : index
    %c0_21 = arith.constant 0 : index
    %32 = vector.load %arg1[%c0_19, %c0_20, %c0_21] : memref<1x1x1xf32, #tpu.memory_space<vmem>>, vector<1x1x1xf32>
    %33 = vector.broadcast %32 : vector<1x1x1xf32> to vector<2x1x16xf32>
    %34 = arith.mulf %31, %33 : vector<2x1x16xf32>
    %c0_22 = arith.constant 0 : index
    %c0_23 = arith.constant 0 : index
    %c0_24 = arith.constant 0 : index
    %35 = vector.load %arg2[%c0_22, %c0_23, %c0_24] : memref<1x1x1xf32, #tpu.memory_space<vmem>>, vector<1x1x1xf32>
    %36 = vector.broadcast %35 : vector<1x1x1xf32> to vector<2x1x16xf32>
    %37 = arith.addf %34, %36 : vector<2x1x16xf32>
    %c0_25 = arith.constant 0 : index
    %c0_26 = arith.constant 0 : index
    %c0_27 = arith.constant 0 : index
    %38 = vector.load %arg5[%c0_25, %c0_26, %c0_27] : memref<2x1x16xf32, #tpu.memory_space<vmem>>, vector<2x1x16xf32>
    tpu.vector_store %arg5[%c0_25, %c0_26, %c0_27], %37 {strides = array<i32>} : memref<2x1x16xf32, #tpu.memory_space<vmem>>, vector<2x1x16xf32>,
    return
  }
}

</mosaic_0001>

<llo_original>
// kernel: tpu_custom_call.1
$region0: #{tpu_custom_call.1}
  #allocation0 [shape = 'u32[]', space=smem, size = 0x4, offset = 0x4, fixed_abs, tag = 'smem constant byte address 0x4 - core index']
  #allocation1 [shape = 'u32[72,128]{1,0:T(1,128)}', space=vmem, size = 0x9000, scoped, tag = 'internal scratch']
  #allocation2 [shape = 'f32[2,3,18]{2,1,0:T(4,128)}', space=vmem, size = 0x1000, scoped, tag = 'scratch operand']
  #allocation3 [shape = 'f32[1,1,1]{2,1,0:T(1,128)S(1)}', space=vmem, size = 0x200, scoped, tag = 'scoped memory for tpu_custom_call.1']
  #allocation4 [shape = 'f32[1,1,1]{2,1,0:T(1,128)S(1)}', space=vmem, size = 0x200, scoped, tag = 'scoped memory for tpu_custom_call.1']
  %s0 = inlined_call_operand.vmem [shape: f32[1,9], index: 0, kind: input, shape index: {}]
  %s1 = inlined_call_operand.<no memory space> [shape: f32[1,1,1], index: 1, kind: input, shape index: {}]
  %s2 = inlined_call_operand.<no memory space> [shape: f32[1,1,1], index: 2, kind: input, shape index: {}]
  %s3 = inlined_call_operand.vmem [shape: f32[2,3,16], index: 3, kind: input, shape index: {}]
  %s4 = inlined_call_operand.vmem [shape: u32[2,1,16], index: 4, kind: input, shape index: {}]
  %s5 = inlined_call_operand.hbm [shape: f32[2,1,16], index: 5, kind: output, shape index: {}]
  %s6 = sld [smem:[#allocation0]]
  $region30: #{tpu_custom_call.1} parent=0
    _
  %s8 = ssub.s32 1, %s6
  %s9 = scalar_select 0, %s8, %s6
  %v10 = vstv %s1
  %11 = vst [vmem:[#allocation3] sm:$0x1] %v10
  %v12 = vstv %s2
  %13 = vst [vmem:[#allocation4] sm:$0x1] %v12
  $region1: #{tpu_custom_call.1} parent=0
    #allocation5 [shape = 'u8[1024]{0}', space=vmem, size = 0x400, scoped, tag = 'output window, operand 0, single buffered']
    #allocation6 [shape = 's32[1]{0}', space=sflag, size = 0x4, scoped, tag = 'scoped memory for tpu_custom_call.1']
    %14 = vsyncpa [#allocation6], 0
    // Predicated region
    $region2: #{tpu_custom_call.1} parent=1 // pred_check
      _
    $region3: #{tpu_custom_call.1} parent=1 // pred_check_branch
      %16 = sbr.rel (0) target = $region5
    $region4: #{tpu_custom_call.1} parent=1 // pred_region
      _
    $region5: #{tpu_custom_call.1} parent=1 // pred_fallthru
      _
    // Predicated region
    $region6: #{tpu_custom_call.1} parent=1 // pred_check
      _
    $region7: #{tpu_custom_call.1} parent=1 // pred_check_branch
      %18 = sbr.rel (0) target = $region9
    $region8: #{tpu_custom_call.1} parent=1 // pred_region
      _
    $region9: #{tpu_custom_call.1} parent=1 // pred_fallthru
      _
    // Predicated region
    $region10: #{tpu_custom_call.1} parent=1 // pred_check
      _
    $region11: #{tpu_custom_call.1} parent=1 // pred_check_branch
      %20 = sbr.rel (0) target = $region13
    $region12: #{tpu_custom_call.1} parent=1 // pred_region
      _
    $region13: #{tpu_custom_call.1} parent=1 // pred_fallthru
      _
    // Predicated region
    $region14: #{tpu_custom_call.1} parent=1 // pred_check
      _
    $region15: #{tpu_custom_call.1} parent=1 // pred_check_branch
      %22 = sbr.rel (0) target = $region17
    $region16: #{tpu_custom_call.1} parent=1 // pred_region
      _
    $region17: #{tpu_custom_call.1} parent=1 // pred_fallthru
      _
    // Predicated region
    $region18: #{tpu_custom_call.1} parent=1 // pred_check
      _
    $region19: #{tpu_custom_call.1} parent=1 // pred_check_branch
      %24 = sbr.rel (0) target = $region21
    $region20: #{tpu_custom_call.1} parent=1 // pred_region
      _
    $region21: #{tpu_custom_call.1} parent=1 // pred_fallthru
      _
    %vm25 = vcmask 141312
    %26 = vst.msk [vmem:[#allocation2] sm:$0x7] %vm25, 0.0
    %27 = vst.msk [vmem:[#allocation2 + $0x4] sm:$0x7] %vm25, 0.0
    %v28 = vld [vmem:[%s3] sm:$0x7]
    %v29 = vld [vmem:[%s3 + $0x4] sm:$0x7]
    %32 = vrot.lane.b32.xlu0 %v28, 1
    %v33 = vpop.permute.xlu0 %32
    %34 = vrot.lane.b32.xlu0 %v29, 1
    %v35 = vpop.permute.xlu0 %34
    %vm38 = vcmask 133128
    %39 = vst.msk [vmem:[#allocation2] sm:$0x7] %vm38, %v33
    %40 = vst.msk [vmem:[#allocation2 + $0x4] sm:$0x7] %vm38, %v35
    %v41 = vld [vmem:[#allocation2] sm:$0x7]
    %v42 = vld [vmem:[#allocation2 + $0x4] sm:$0x7]
    %v45 = vrot.slane %v41, 5
    %v46 = vrot.slane %v42, 5
    %47 = vrot.lane.b32.xlu0 %v45, 127
    %v48 = vpop.permute.xlu0 %47
    %49 = vrot.lane.b32.xlu0 %v46, 127
    %v50 = vpop.permute.xlu0 %49
    %v53 = vrot.slane %v41, 2
    %v54 = vrot.slane %v42, 2
    %55 = vrot.lane.b32.xlu0 %v53, 126
    %v56 = vpop.permute.xlu0 %55
    %57 = vrot.lane.b32.xlu0 %v54, 126
    %v58 = vpop.permute.xlu0 %57
    %vm61 = vcmask 1042432
    %v62 = vsel %vm61, %v41, %v48
    %v63 = vsel %vm61, %v42, %v50
    %vm64 = vcmask 1045504
    %v65 = vsel %vm64, %v62, %v56
    %v66 = vsel %vm64, %v63, %v58
    %v67 = vld [vmem:[%s0] sm:$0x1]
    %vm68 = vcmask 72704
    %v70 = vsel %vm68, %v67, 0
    %vm72 = vcmask 1040384
    %v73 = vsel %vm72, %v56, 0
    %75 = vmatpush.msra.mxu0 0.0
    %76 = vmatpush.msra.mxu0 0.0
    %77 = vmatpush.msra.mxu0 0.0
    %78 = vmatpush.msra.mxu0 0.0
    %79 = vmatpush.msra.mxu0 0.0
    %80 = vmatpush.msra.mxu0 0.0
    %81 = vmatpush.msra.mxu0 0.0
    %82 = vmatpush.msra.mxu0 0.0
    %83 = vmatpush.msra.mxu0 0.0
    %84 = vmatpush.msra.mxu0 0.0
    %85 = vmatpush.msra.mxu0 0.0
    %86 = vmatpush.msra.mxu0 0.0
    %87 = vmatpush.msra.mxu0 0.0
    %88 = vmatpush.msra.mxu0 0.0
    %89 = vmatpush.msra.mxu0 %v73
    %90 = vmatpush.msra.mxu0 %v65
    %91 = vmatmul.f32.gmra.mxu0 %v70
    %v92 = vpop.f32.mrf.mxu0
    %v93 = vadd.f32 0.0, %v92
    %94 = vdwg.mxu0
    %v95 = vsel %vm72, %v58, 0
    %97 = vmatpush.msra.mxu0 0.0
    %98 = vmatpush.msra.mxu0 0.0
    %99 = vmatpush.msra.mxu0 0.0
    %100 = vmatpush.msra.mxu0 0.0
    %101 = vmatpush.msra.mxu0 0.0
    %102 = vmatpush.msra.mxu0 0.0
    %103 = vmatpush.msra.mxu0 0.0
    %104 = vmatpush.msra.mxu0 0.0
    %105 = vmatpush.msra.mxu0 0.0
    %106 = vmatpush.msra.mxu0 0.0
    %107 = vmatpush.msra.mxu0 0.0
    %108 = vmatpush.msra.mxu0 0.0
    %109 = vmatpush.msra.mxu0 0.0
    %110 = vmatpush.msra.mxu0 0.0
    %111 = vmatpush.msra.mxu0 %v95
    %112 = vmatpush.msra.mxu0 %v66
    %113 = vmatmul.f32.gmra.mxu0 %v70
    %v114 = vpop.f32.mrf.mxu0
    %v115 = vadd.f32 0.0, %v114
    %116 = vdwg.mxu0
    %v117 = vmax.f32 %v93, 0.0
    %v118 = vmax.f32 %v115, 0.0
    %vm119 = vcmask 122880
    %v120 = vsel %vm119, %v117, 0.0
    %v121 = vsel %vm119, %v118, 0.0
    %v122 = vadd.f32 %v120, %v121
    %123 = vadd.xlane.f32.xlu0 %v122
    %v124 = vpop.xlane.xlu0 %123
    %v125 = vmul.f32 %v124, 0.03125
    %v126 = vsub.f32 %v117, %v125
    %v127 = vsub.f32 %v118, %v125
    %v128 = vmul.f32 %v126, %v126
    %v129 = vmul.f32 %v127, %v127
    %v130 = vsel %vm119, %v128, 0.0
    %v131 = vsel %vm119, %v129, 0.0
    %v132 = vadd.f32 %v130, %v131
    %133 = vadd.xlane.f32.xlu0 %v132
    %v134 = vpop.xlane.xlu0 %133
    %v135 = vmul.f32 %v134, 0.03125
    %v136 = vadd.f32 %v135, 1e-05
    %v137 = vrsqrt.pop %v136
    %v138 = vmul.f32 %v137, %v136
    %v139 = vmul.f32 %v138, %v137
    %v140 = vmul.f32 0.5, %v139
    %v141 = vsub.f32 1.5, %v140
    %v142 = vmul.f32 %v137, %v141
    %vm143 = vweird.f32 %v136
    %vm144 = vweird.f32 %v137
    %vm145 = vmor %vm143, %vm144
    %v146 = vsel %vm145, %v137, %v142
    %v147 = vmul.f32 %v126, %v146
    %v148 = vmul.f32 %v127, %v146
    %v149 = vld [vmem:[#allocation3] sm:$0x1]
    %151 = vset.pattern.permute.xlu0 0
    %152 = vperm.xlu0 %151, %v149
    %v153 = vpop.permute.xlu0 %152
    %v155 = vperm.slane %v153, 0
    %v156 = vmul.f32 %v147, %v155
    %v157 = vmul.f32 %v148, %v155
    %v158 = vld [vmem:[#allocation4] sm:$0x1]
    %160 = vset.pattern.permute.xlu0 0
    %161 = vperm.xlu0 %160, %v158
    %v162 = vpop.permute.xlu0 %161
    %v164 = vperm.slane %v162, 0
    %v165 = vadd.f32 %v156, %v164
    %v166 = vadd.f32 %v157, %v164
    %167 = vst.msk [vmem:[#allocation5] sm:$0x1] %vm119, %v165
    %168 = vst.msk [vmem:[#allocation5 + $0x1] sm:$0x1] %vm119, %v166
    // Predicated region
    $region22: #{tpu_custom_call.1} parent=1 // pred_check
      _
    $region23: #{tpu_custom_call.1} parent=1 // pred_check_branch
      %170 = sbr.rel (0) target = $region25
    $region24: #{tpu_custom_call.1} parent=1 // pred_region
      %172 = vsyncadd [#allocation6], 0
      %s173 = sshll.u32 [#allocation5], 4
      %s174 = int_to_ptr.vmem [resolvable:$true] %s173
      %s175 = sshll.u32 %s5, 4
      %s176 = int_to_ptr.hbm [resolvable:$true] %s175
      %181 = dma.vmem_to_hbm [thread:$0]  %s174, 32, %s176, [#allocation6], 16, 16, 1
    $region25: #{tpu_custom_call.1} parent=1 // pred_fallthru
      _
    // Predicated region
    $region26: #{tpu_custom_call.1} parent=1 // pred_check
      _
    $region27: #{tpu_custom_call.1} parent=1 // pred_check_branch
      %183 = sbr.rel (0) target = $region29
    $region28: #{tpu_custom_call.1} parent=1 // pred_region
      %185 = dma.done [#allocation6], 32
    $region29: #{tpu_custom_call.1} parent=1 // pred_fallthru
      _
    %186 = vsyncpa [#allocation6], 1

</llo_original>
